<compile_context>
chip_gen: v5e
topology: v5e:2x2
jax: 0.10.0
libtpu: 0.0.40
codegen_flags: <defaults>
</compile_context>

<pallas_src>
import math
import numpy as np
import jax
import jax.numpy as jnp
from jax import lax
from jax.experimental import pallas as pl
from jax.experimental.pallas import tpu as pltpu

LANE = 128                           # lane width of the flattened slabs
MAX_BLOCK_ROWS = 8192                # 8192*128*4B = 4 MiB f32 per block per buffer
VMEM_LIMIT_BYTES = 48 * 1024 * 1024  # 4 inputs x 2 buffers x 4 MiB = 32 MiB + scratch < 48 MiB
                                     # (fits v7x's 64 MiB physical VMEM with headroom)


def _ceil_div(a, b):
    return -(-a // b)


def _frame_slab(x):
    """Flatten each frame to a lane-dense (rows, 128) slab: (T, ...) -> (T, rows, 128).

    Copy-free (pure reshape) whenever per-frame numel % 128 == 0, which holds for this
    model's image / latent tensors.  Only a ragged (<128 element) remainder is padded;
    pad value 0 is exactly neutral for both reductions (diff=0 for MSE since out/target
    are padded identically, and 1+0-0-exp(0)=0 for KL)."""
    x = jnp.asarray(x)
    t = x.shape[0]
    flat = x.reshape(t, -1)                      # dtype preserved (bf16 stays bf16)
    n = flat.shape[1]
    rem = (-n) % LANE
    if rem:
        # TODO(synk): only hit when per-frame numel % 128 != 0; jnp.pad materializes a copy.
        flat = jnp.pad(flat, ((0, 0), (0, rem)))
    return flat.reshape(t, -1, LANE)


def _stream_cfg(rows):
    """(block_rows, num_blocks, needs_tail_mask, acc_rows) for a per-frame (rows,128) slab."""
    if rows <= MAX_BLOCK_ROWS:
        br, nb = rows, 1                          # full-extent block, no ragged tail
    else:
        br, nb = MAX_BLOCK_ROWS, _ceil_div(rows, MAX_BLOCK_ROWS)
    mask = (nb * br != rows)
    acc_rows = 8 if br % 8 == 0 else 1            # (8,128) partial acc in the hot case
    return br, nb, mask, acc_rows


def _block_map(nb, inner):
    """index_map for a stream with nb blocks inside a grid of `inner` inner steps."""
    if nb == inner:                               # never out of range: no clamp needed
        return lambda t, j: (t, j, 0)
    # Clamp keeps the auto-DMA in bounds; pl.when guards skip the accumulate.
    return lambda t, j: (t, jnp.minimum(j, nb - 1), 0)


def _emit_stream(j, nb, mask, inner, body):
    """Emit the per-stream accumulate with an unmasked fast path.

    The tail mask (iota + where) is only paid by the final ragged block; all other
    blocks run the lean path.  Guards are only emitted when actually required."""
    if mask:
        if nb > 1:
            @pl.when(j < nb - 1)
            def _():
                body(False)

        @pl.when(j == nb - 1)
        def _():
            body(True)
    else:
        if nb == inner:
            body(False)                           # always valid: no guard at all
        else:
            @pl.when(j < nb)
            def _():
                body(False)


# ----------------------------- fused per-frame Pallas kernel ------------------------------

def _make_framewise_kernel(img_cfg, lat_cfg, inner):
    rows_i, br_i, nb_i, mask_i, acc_i = img_cfg
    rows_l, br_l, nb_l, mask_l, acc_l = lat_cfg

    def fold(x, br, acc_rows):
        # Reduce a (br,128) block to the accumulator shape with pure vreg adds when
        # br is a multiple of 8; the cross-sublane fold is deferred to the wrapper.
        if acc_rows == 8:
            return jnp.sum(x.reshape(br // 8, 8, LANE), axis=0)
        return jnp.sum(x, axis=0, keepdims=True)

    def kernel(out_ref, tgt_ref, mu_ref, lv_ref, o_mse_ref, o_kl_ref, mse_acc, kl_acc):
        j = pl.program_id(1)                      # block within frame (reduction axis)

        @pl.when(j == 0)
        def _():
            mse_acc[...] = jnp.zeros_like(mse_acc)
            kl_acc[...] = jnp.zeros_like(kl_acc)

        # ---- sum((out - target)^2) over this frame's image blocks ----
        def img_body(masked):
            d = out_ref[...].astype(jnp.float32) - tgt_ref[...].astype(jnp.float32)
            d2 = d * d
            if masked:
                # Edge-block rows past rows_i hold arbitrary-but-finite garbage; the
                # select below discards them (select does not propagate NaN/Inf).
                rid = j * br_i + lax.broadcasted_iota(jnp.int32, (br_i, LANE), 0)
                d2 = jnp.where(rid < rows_i, d2, 0.0)
            mse_acc[...] += fold(d2, br_i, acc_i)

        # ---- sum(1 + logvar - mu^2 - exp(logvar)) over this frame's latent blocks ----
        def lat_body(masked):
            mu = mu_ref[...].astype(jnp.float32)
            lv = lv_ref[...].astype(jnp.float32)
            t = 1.0 + lv - mu * mu - jnp.exp(lv)
            if masked:
                rid = j * br_l + lax.broadcasted_iota(jnp.int32, (br_l, LANE), 0)
                t = jnp.where(rid < rows_l, t, 0.0)
            kl_acc[...] += fold(t, br_l, acc_l)

        _emit_stream(j, nb_i, mask_i, inner, img_body)
        _emit_stream(j, nb_l, mask_l, inner, lat_body)

        @pl.when(j == inner - 1)
        def _():
            o_mse_ref[...] = mse_acc[...]
            o_kl_ref[...] = kl_acc[...]

    return kernel


def fused_framewise_mse_kl_sums(outs, targets, mus, logvars):
    """One pallas_call over all frames.

    Returns per-frame (sum((out-target)^2), sum(1+logvar-mu^2-exp(logvar))), both f32,
    shape (T,)."""
    assert outs.shape == targets.shape and mus.shape == logvars.shape
    assert outs.shape[0] == mus.shape[0]
    a, b = _frame_slab(outs), _frame_slab(targets)
    m, lv = _frame_slab(mus), _frame_slab(logvars)

    T = a.shape[0]
    rows_i, rows_l = a.shape[1], m.shape[1]
    br_i, nb_i, mask_i, acc_i = _stream_cfg(rows_i)
    br_l, nb_l, mask_l, acc_l = _stream_cfg(rows_l)
    inner = max(nb_i, nb_l)

    kernel = _make_framewise_kernel((rows_i, br_i, nb_i, mask_i, acc_i),
                                    (rows_l, br_l, nb_l, mask_l, acc_l), inner)

    mse_parts, kl_parts = pl.pallas_call(
        kernel,
        out_shape=(jax.ShapeDtypeStruct((T, acc_i, LANE), jnp.float32),
                   jax.ShapeDtypeStruct((T, acc_l, LANE), jnp.float32)),
        grid_spec=pltpu.PrefetchScalarGridSpec(
            num_scalar_prefetch=0,
            grid=(T, inner),
            in_specs=[pl.BlockSpec((None, br_i, LANE), _block_map(nb_i, inner)),
                      pl.BlockSpec((None, br_i, LANE), _block_map(nb_i, inner)),
                      pl.BlockSpec((None, br_l, LANE), _block_map(nb_l, inner)),
                      pl.BlockSpec((None, br_l, LANE), _block_map(nb_l, inner))],
            out_specs=[pl.BlockSpec((None, acc_i, LANE), lambda t, j: (t, 0, 0)),
                       pl.BlockSpec((None, acc_l, LANE), lambda t, j: (t, 0, 0))],
            scratch_shapes=[pltpu.VMEM((acc_i, LANE), jnp.float32),
                            pltpu.VMEM((acc_l, LANE), jnp.float32)],
        ),
        compiler_params=pltpu.CompilerParams(
            dimension_semantics=("parallel", "arbitrary"),
            vmem_limit_bytes=VMEM_LIMIT_BYTES),
    )(a, b, m, lv)

    # Cross-sublane + lane fold happens exactly once, outside the hot loop.
    return jnp.sum(mse_parts, axis=(1, 2)), jnp.sum(kl_parts, axis=(1, 2))


# ------------------------------ model-level wrappers -----------------------------

def generate_psnr_from_mse(mse, data_range=1.0):
    """Generate_PSNR, reusing the already-computed MSE (no second HBM pass)."""
    return 20.0 * math.log10(data_range) - 10.0 * jnp.log10(mse)


def vae_framewise_stats(outs, targets, mus, logvars, batch_size, data_range=1.0):
    """Per-frame (mse, kl, psnr) for ALL frames from ONE fused kernel launch (val path)."""
    per_frame_numel = float(np.prod(outs.shape[1:]))
    sq_sums, kl_ints = fused_framewise_mse_kl_sums(outs, targets, mus, logvars)
    mse = sq_sums / per_frame_numel
    kl = (-0.5) * kl_ints / batch_size
    return mse, kl, generate_psnr_from_mse(mse, data_range)


def vae_step_stats(out, target, mu, logvar, batch_size, data_range=1.0):
    """Single-frame (mse, kl, psnr) — degenerate T=1 case of the framewise kernel."""
    mse, kl, psnr = vae_framewise_stats(out[None], target[None], mu[None], logvar[None],
                                        batch_size, data_range)
    return mse[0], kl[0], psnr[0]


def vae_sequence_loss(outs, targets, mus, logvars, beta, batch_size, vi_len):
    """loss = (sum_t MSE(out_t, img_t) + beta * sum_t KL_t) / (vi_len - 1), with the whole
    (vi_len-1)-frame sequence reduced in a single fused kernel launch."""
    per_frame_numel = float(np.prod(outs.shape[1:]))
    sq_sums, kl_ints = fused_framewise_mse_kl_sums(outs, targets, mus, logvars)
    mse_total = jnp.sum(sq_sums) / per_frame_numel   # == sum over frames of per-frame means
    kl_total = (-0.5) * jnp.sum(kl_ints) / batch_size
    return (mse_total + beta * kl_total) / (vi_len - 1)


# --------------------------- kl_annealing (host side) ----------------------------

class kl_annealing:
    def __init__(self, args, current_epoch=0):
        self.cur = 0
        self.type = args.kl_anneal_type
        self.cycle = args.kl_anneal_cycle
        self.ratio = args.kl_anneal_ratio
        self.total_iter = args.num_epoch * args.train_vi_len
        self.beta_list = np.ones(self.total_iter)
        if self.type == 'Monotonic':
            self.cycle = 1
            self.frange_cycle_linear(self.total_iter, n_cycle=self.cycle, ratio=0.25)
        elif self.type == 'Cyclical':
            self.frange_cycle_linear(self.total_iter, n_cycle=self.cycle, ratio=self.ratio)
        elif self.type == 'None':
            self.beta_list = np.zeros(self.total_iter)

    def update(self):
        self.cur += 1

    def get_beta(self):
        return self.beta_list[self.cur]

    def frange_cycle_linear(self, n_iter, start=0.0, stop=1.0, n_cycle=1, ratio=1):
        times = n_iter / n_cycle
        step = (stop - start) / (times * ratio)
        for c in range(n_cycle):
            s, i = (start, 0)
            while s <= stop and int(i + c * times) < n_iter:
                self.beta_list[int(i + c * times)] = s
                s += step
                i += 1


# --------------------------------- main -------------------------------------------

class _Args:
    F_dim = 32
    L_dim = 16
    N_dim = 4
    D_out_dim = 32
    frame_H = 16
    frame_W = 16
    batch_size = 2
    train_vi_len = 8
    val_vi_len = 8
    num_epoch = 2
    kl_anneal_type = 'Cyclical'
    kl_anneal_cycle = 2
    kl_anneal_ratio = 0.5
    lr = 1e-3
    tfr = 1.0
    tfr_d_step = 0.1
    tfr_sde = 10


if __name__ == "__main__":
    args = _Args()
    key = jax.random.PRNGKey(0)
    k1, k2, k3, k4 = jax.random.split(key, 4)

    T = args.train_vi_len - 1  # frames 1 .. vi_len-1 of the training/val loop
    outs = jax.random.uniform(
        k1, (T, args.batch_size, 3, args.frame_H, args.frame_W), dtype=jnp.float32)
    targets = jax.random.uniform(
        k2, (T, args.batch_size, 3, args.frame_H, args.frame_W), dtype=jnp.float32)
    mus = 0.1 * jax.random.normal(
        k3, (T, args.batch_size, args.N_dim, args.frame_H, args.frame_W), dtype=jnp.float32)
    logvars = 0.1 * jax.random.normal(
        k4, (T, args.batch_size, args.N_dim, args.frame_H, args.frame_W), dtype=jnp.float32)

    ann = kl_annealing(args)
    ann.update(); ann.update()          # advance the schedule so beta != 0 (exercise KL)
    beta = float(ann.get_beta())

    # whole-sequence training loss: ONE fused kernel launch for all frames
    loss = vae_sequence_loss(outs, targets, mus, logvars, beta,
                             args.batch_size, args.train_vi_len)
    # val path: per-frame mse/kl/PSNR for ALL frames from the same single-launch kernel
    mse_t, kl_t, psnr_t = vae_framewise_stats(outs, targets, mus, logvars, args.batch_size)
    # single-frame convenience path (exercises T=1 compile)
    mse0, kl0, psnr0 = vae_step_stats(outs[0], targets[0], mus[0], logvars[0],
                                      args.batch_size)
    loss, mse_t, kl_t, psnr_t, mse0, kl0, psnr0 = jax.block_until_ready(
        (loss, mse_t, kl_t, psnr_t, mse0, kl0, psnr0))

    # ---- pure-JAX references ----
    mse_ref_t = jnp.mean((outs - targets) ** 2, axis=(1, 2, 3, 4))
    kl_ref_t = (-0.5 * jnp.sum(1.0 + logvars - mus ** 2 - jnp.exp(logvars),
                               axis=(1, 2, 3, 4)) / args.batch_size)
    loss_ref = (jnp.sum(mse_ref_t) + beta * jnp.sum(kl_ref_t)) / (args.train_vi_len - 1)
    psnr_ref_t = -10.0 * jnp.log10(mse_ref_t)

    np.testing.assert_allclose(np.asarray(loss), np.asarray(loss_ref), rtol=1e-5, atol=1e-5)
    np.testing.assert_allclose(np.asarray(mse_t), np.asarray(mse_ref_t), rtol=1e-5, atol=1e-6)
    np.testing.assert_allclose(np.asarray(kl_t), np.asarray(kl_ref_t), rtol=1e-5, atol=1e-5)
    np.testing.assert_allclose(np.asarray(psnr_t), np.asarray(psnr_ref_t), rtol=1e-5, atol=1e-5)
    np.testing.assert_allclose(np.asarray(mse0), np.asarray(mse_ref_t[0]), rtol=1e-5, atol=1e-6)
    np.testing.assert_allclose(np.asarray(kl0), np.asarray(kl_ref_t[0]), rtol=1e-5, atol=1e-5)
    np.testing.assert_allclose(np.asarray(psnr0), np.asarray(psnr_ref_t[0]), rtol=1e-5, atol=1e-5)

    print("KERNEL_OK")
</pallas_src>

<mosaic_0001>
module attributes {stable_mosaic.version = 11 : i64} {
  func.func @kernel(%arg0: i32, %arg1: i32, %arg2: memref<1x12x128xf32, #tpu.memory_space<vmem>>, %arg3: memref<1x12x128xf32, #tpu.memory_space<vmem>>, %arg4: memref<1x16x128xf32, #tpu.memory_space<vmem>>, %arg5: memref<1x16x128xf32, #tpu.memory_space<vmem>>, %arg6: memref<1x1x128xf32, #tpu.memory_space<vmem>>, %arg7: memref<1x8x128xf32, #tpu.memory_space<vmem>>, %arg8: memref<1x128xf32, #tpu.memory_space<vmem>>, %arg9: memref<8x128xf32, #tpu.memory_space<vmem>>) attributes {dimension_semantics = [#tpu.dimension_semantics<parallel>, #tpu.dimension_semantics<arbitrary>], iteration_bounds = array<i64: 7, 1>, scalar_prefetch = 0 : i64, scratch_operands = 2 : i64, tpu.core_type = #tpu.core_type<tc>, window_params = [{transform_indices = @transform_0, window_bounds = array<i64: 1, 12, 128>}, {transform_indices = @transform_1, window_bounds = array<i64: 1, 12, 128>}, {transform_indices = @transform_2, window_bounds = array<i64: 1, 16, 128>}, {transform_indices = @transform_3, window_bounds = array<i64: 1, 16, 128>}, {transform_indices = @transform_4, window_bounds = array<i64: 1, 1, 128>}, {transform_indices = @transform_5, window_bounds = array<i64: 1, 8, 128>}]} {
    %c0_i32 = arith.constant 0 : i32
    %0 = arith.cmpi eq, %arg1, %c0_i32 : i32
    %1 = arith.extui %0 : i1 to i32
    %c0_i32_0 = arith.constant 0 : i32
    %2 = arith.cmpi ne, %1, %c0_i32_0 : i32
    scf.if %2 {
      %cst_24 = arith.constant 0.000000e+00 : f32
      %32 = vector.broadcast %cst_24 : f32 to vector<1x128xf32>
      %c0_25 = arith.constant 0 : index
      %c0_26 = arith.constant 0 : index
      %33 = vector.load %arg8[%c0_25, %c0_26] : memref<1x128xf32, #tpu.memory_space<vmem>>, vector<1x128xf32>
      tpu.vector_store %arg8[%c0_25, %c0_26], %32 {strides = array<i32>} : memref<1x128xf32, #tpu.memory_space<vmem>>, vector<1x128xf32>,
      %cst_27 = arith.constant 0.000000e+00 : f32
      %34 = vector.broadcast %cst_27 : f32 to vector<8x128xf32>
      %c0_28 = arith.constant 0 : index
      %c0_29 = arith.constant 0 : index
      %35 = vector.load %arg9[%c0_28, %c0_29] : memref<8x128xf32, #tpu.memory_space<vmem>>, vector<8x128xf32>
      tpu.vector_store %arg9[%c0_28, %c0_29], %34 {strides = array<i32>} : memref<8x128xf32, #tpu.memory_space<vmem>>, vector<8x128xf32>,
    } else {
    }
    %c0 = arith.constant 0 : index
    %c0_1 = arith.constant 0 : index
    %c0_2 = arith.constant 0 : index
    %3 = vector.load %arg2[%c0, %c0_1, %c0_2] : memref<1x12x128xf32, #tpu.memory_space<vmem>>, vector<1x12x128xf32>
    %4 = vector.shape_cast %3 : vector<1x12x128xf32> to vector<12x128xf32>
    %c0_3 = arith.constant 0 : index
    %c0_4 = arith.constant 0 : index
    %c0_5 = arith.constant 0 : index
    %5 = vector.load %arg3[%c0_3, %c0_4, %c0_5] : memref<1x12x128xf32, #tpu.memory_space<vmem>>, vector<1x12x128xf32>
    %6 = vector.shape_cast %5 : vector<1x12x128xf32> to vector<12x128xf32>
    %7 = arith.subf %4, %6 : vector<12x128xf32>
    %8 = arith.mulf %7, %7 : vector<12x128xf32>
    %c0_6 = arith.constant 0 : index
    %c0_7 = arith.constant 0 : index
    %9 = vector.load %arg8[%c0_6, %c0_7] : memref<1x128xf32, #tpu.memory_space<vmem>>, vector<1x128xf32>
    %cst = arith.constant dense<0.000000e+00> : vector<128xf32>
    %10 = vector.multi_reduction <add>, %8, %cst [0] : vector<12x128xf32> to vector<128xf32>
    %11 = vector.shape_cast %10 : vector<128xf32> to vector<1x128xf32>
    %12 = arith.addf %9, %11 : vector<1x128xf32>
    %c0_8 = arith.constant 0 : index
    %c0_9 = arith.constant 0 : index
    %13 = vector.load %arg8[%c0_8, %c0_9] : memref<1x128xf32, #tpu.memory_space<vmem>>, vector<1x128xf32>
    tpu.vector_store %arg8[%c0_8, %c0_9], %12 {strides = array<i32>} : memref<1x128xf32, #tpu.memory_space<vmem>>, vector<1x128xf32>,
    %c0_10 = arith.constant 0 : index
    %c0_11 = arith.constant 0 : index
    %c0_12 = arith.constant 0 : index
    %14 = vector.load %arg4[%c0_10, %c0_11, %c0_12] : memref<1x16x128xf32, #tpu.memory_space<vmem>>, vector<1x16x128xf32>
    %15 = vector.shape_cast %14 : vector<1x16x128xf32> to vector<16x128xf32>
    %c0_13 = arith.constant 0 : index
    %c0_14 = arith.constant 0 : index
    %c0_15 = arith.constant 0 : index
    %16 = vector.load %arg5[%c0_13, %c0_14, %c0_15] : memref<1x16x128xf32, #tpu.memory_space<vmem>>, vector<1x16x128xf32>
    %17 = vector.shape_cast %16 : vector<1x16x128xf32> to vector<16x128xf32>
    %cst_16 = arith.constant 1.000000e+00 : f32
    %18 = vector.broadcast %cst_16 : f32 to vector<16x128xf32>
    %19 = arith.addf %18, %17 : vector<16x128xf32>
    %20 = arith.mulf %15, %15 : vector<16x128xf32>
    %21 = arith.subf %19, %20 : vector<16x128xf32>
    %22 = math.exp %17 : vector<16x128xf32>
    %23 = arith.subf %21, %22 : vector<16x128xf32>
    %c0_17 = arith.constant 0 : index
    %c0_18 = arith.constant 0 : index
    %24 = vector.load %arg9[%c0_17, %c0_18] : memref<8x128xf32, #tpu.memory_space<vmem>>, vector<8x128xf32>
    %25 = vector.shape_cast %23 : vector<16x128xf32> to vector<2x8x128xf32>
    %cst_19 = arith.constant dense<0.000000e+00> : vector<8x128xf32>
    %26 = vector.multi_reduction <add>, %25, %cst_19 [0] : vector<2x8x128xf32> to vector<8x128xf32>
    %27 = arith.addf %24, %26 : vector<8x128xf32>
    %c0_20 = arith.constant 0 : index
    %c0_21 = arith.constant 0 : index
    %28 = vector.load %arg9[%c0_20, %c0_21] : memref<8x128xf32, #tpu.memory_space<vmem>>, vector<8x128xf32>
    tpu.vector_store %arg9[%c0_20, %c0_21], %27 {strides = array<i32>} : memref<8x128xf32, #tpu.memory_space<vmem>>, vector<8x128xf32>,
    %c0_i32_22 = arith.constant 0 : i32
    %29 = arith.cmpi eq, %arg1, %c0_i32_22 : i32
    %30 = arith.extui %29 : i1 to i32
    %c0_i32_23 = arith.constant 0 : i32
    %31 = arith.cmpi ne, %30, %c0_i32_23 : i32
    scf.if %31 {
      %c0_24 = arith.constant 0 : index
      %c0_25 = arith.constant 0 : index
      %32 = vector.load %arg8[%c0_24, %c0_25] : memref<1x128xf32, #tpu.memory_space<vmem>>, vector<1x128xf32>
      %c0_26 = arith.constant 0 : index
      %c0_27 = arith.constant 0 : index
      %c0_28 = arith.constant 0 : index
      %33 = vector.load %arg6[%c0_26, %c0_27, %c0_28] : memref<1x1x128xf32, #tpu.memory_space<vmem>>, vector<1x1x128xf32>
      %34 = vector.shape_cast %33 : vector<1x1x128xf32> to vector<1x128xf32>
      %35 = vector.shape_cast %32 : vector<1x128xf32> to vector<1x1x128xf32>
      tpu.vector_store %arg6[%c0_26, %c0_27, %c0_28], %35 {strides = array<i32>} : memref<1x1x128xf32, #tpu.memory_space<vmem>>, vector<1x1x128xf32>,
      %c0_29 = arith.constant 0 : index
      %c0_30 = arith.constant 0 : index
      %36 = vector.load %arg9[%c0_29, %c0_30] : memref<8x128xf32, #tpu.memory_space<vmem>>, vector<8x128xf32>
      %c0_31 = arith.constant 0 : index
      %c0_32 = arith.constant 0 : index
      %c0_33 = arith.constant 0 : index
      %37 = vector.load %arg7[%c0_31, %c0_32, %c0_33] : memref<1x8x128xf32, #tpu.memory_space<vmem>>, vector<1x8x128xf32>
      %38 = vector.shape_cast %37 : vector<1x8x128xf32> to vector<8x128xf32>
      %39 = vector.shape_cast %36 : vector<8x128xf32> to vector<1x8x128xf32>
      tpu.vector_store %arg7[%c0_31, %c0_32, %c0_33], %39 {strides = array<i32>} : memref<1x8x128xf32, #tpu.memory_space<vmem>>, vector<1x8x128xf32>,
    } else {
    }
    return
  }
  func.func @transform_0(%arg0: i32, %arg1: i32) -> (i32, i32, i32) {
    %c0_i32 = arith.constant 0 : i32
    %c0_i32_0 = arith.constant 0 : i32
    return %arg0, %arg1, %c0_i32 : i32, i32, i32
  }
  func.func @transform_1(%arg0: i32, %arg1: i32) -> (i32, i32, i32) {
    %c0_i32 = arith.constant 0 : i32
    %c0_i32_0 = arith.constant 0 : i32
    return %arg0, %arg1, %c0_i32 : i32, i32, i32
  }
  func.func @transform_2(%arg0: i32, %arg1: i32) -> (i32, i32, i32) {
    %c0_i32 = arith.constant 0 : i32
    %c0_i32_0 = arith.constant 0 : i32
    return %arg0, %arg1, %c0_i32 : i32, i32, i32
  }
  func.func @transform_3(%arg0: i32, %arg1: i32) -> (i32, i32, i32) {
    %c0_i32 = arith.constant 0 : i32
    %c0_i32_0 = arith.constant 0 : i32
    return %arg0, %arg1, %c0_i32 : i32, i32, i32
  }
  func.func @transform_4(%arg0: i32, %arg1: i32) -> (i32, i32, i32) {
    %c0_i32 = arith.constant 0 : i32
    %c0_i32_0 = arith.constant 0 : i32
    %c0_i32_1 = arith.constant 0 : i32
    return %arg0, %c0_i32, %c0_i32_0 : i32, i32, i32
  }
  func.func @transform_5(%arg0: i32, %arg1: i32) -> (i32, i32, i32) {
    %c0_i32 = arith.constant 0 : i32
    %c0_i32_0 = arith.constant 0 : i32
    %c0_i32_1 = arith.constant 0 : i32
    return %arg0, %c0_i32, %c0_i32_0 : i32, i32, i32
  }
}

</mosaic_0001>

<llo_original>
// kernel: tpu_custom_call.1
$region0: #{tpu_custom_call.1}
  #allocation0 [shape = 'u32[]', space=smem, size = 0x4, offset = 0x4, fixed_abs, tag = 'smem constant byte address 0x4 - core index']
  #allocation1 [shape = 'u32[72,128]{1,0:T(1,128)}', space=vmem, size = 0x9000, scoped, tag = 'internal scratch']
  #allocation2 [shape = 'f32[1,128]{1,0:T(1,128)}', space=vmem, size = 0x200, scoped, tag = 'scratch operand']
  #allocation3 [shape = 'f32[8,128]{1,0:T(8,128)}', space=vmem, size = 0x1000, scoped, tag = 'scratch operand']
  %s0 = inlined_call_operand.vmem [shape: f32[7,12,128], index: 0, kind: input, shape index: {}]
  %s1 = inlined_call_operand.vmem [shape: f32[7,12,128], index: 1, kind: input, shape index: {}]
  %s2 = inlined_call_operand.vmem [shape: f32[7,16,128], index: 2, kind: input, shape index: {}]
  %s3 = inlined_call_operand.vmem [shape: f32[7,16,128], index: 3, kind: input, shape index: {}]
  %s4 = inlined_call_operand.hbm [shape: f32[7,1,128], index: 4, kind: output, shape index: {0}]
  %s5 = inlined_call_operand.hbm [shape: f32[7,8,128], index: 5, kind: output, shape index: {1}]
  %6 = xla_tuple %s4, %s5
  %s7 = sld [smem:[#allocation0]]
  $region65: #{tpu_custom_call.1} parent=0
    _
  %s9 = ssub.s32 1, %s7
  %s10 = scalar_select 0, %s9, %s7
  $region1: #{tpu_custom_call.1} parent=0
    #allocation4 [shape = 'u8[1024]{0}', space=vmem, size = 0x400, scoped, tag = 'output window, operand 0']
    #allocation5 [shape = 's32[2]{0}', space=sflag, size = 0x8, scoped, tag = 'scoped memory for tpu_custom_call.1']
    #allocation6 [shape = 'u8[8192]{0}', space=vmem, size = 0x2000, scoped, tag = 'output window, operand 1']
    #allocation7 [shape = 's32[2]{0}', space=sflag, size = 0x8, scoped, tag = 'scoped memory for tpu_custom_call.1']
    %11 = vsyncpa [#allocation5], 0
    %s12 = scalar_lea.sflag [#allocation5], 1
    %13 = vsyncpa %s12, 0
    %14 = vsyncpa [#allocation7], 0
    %s15 = scalar_lea.sflag [#allocation7], 1
    %16 = vsyncpa %s15, 0
    loop: start=0, step=1, limit=9
    $region2: #{tpu_custom_call.1} parent=1 // loop_pre_header
      _
    $region3: #{tpu_custom_call.1} parent=1 // loop_header
      %s18 = sphi 0, %s22
      %p19 = scmp.ge.s32.totalorder %s18, 9
      %s25 = sphi 0, %s37
      %s26 = sphi 0, %s33
      %s27 = sphi 0, %s25
      %s28 = sphi 0, %s26
      %s29 = sphi 0, %s27
      %s30 = sphi 0, %s28
      %s42 = sphi 0, %s44
      %s45 = sphi 0, %s42
      %s46 = sphi 0, %s45
      %s62 = sphi 0, %s46
      %s70 = sphi 0, %s72
      %s73 = sphi 0, %s70
      %s74 = sphi 0, %s73
      %s90 = sphi 0, %s74
      %s98 = sphi 0, %s100
      %s101 = sphi 0, %s98
      %s102 = sphi 0, %s101
      %s118 = sphi 0, %s102
      %s126 = sphi 0, %s128
      %s129 = sphi 0, %s126
      %s130 = sphi 0, %s129
      %s146 = sphi 0, %s130
      %s152 = sphi 0, %s154
      %s155 = sphi 0, %s152
      %s156 = sphi 0, %s155
      %s172 = sphi 0, %s156
      %s178 = sphi 0, %s180
      %s181 = sphi 0, %s178
      %s182 = sphi 0, %s181
      %s198 = sphi 0, %s182
    $region4: #{tpu_custom_call.1} parent=1 // loop_header_branch
      %21 = sbr.rel (%p19) target = $region8
    $region5: #{tpu_custom_call.1} parent=1 // loop_body
      %s23 = ssub.s32 %s18, 1
      %s24 = ssub.s32 %s18, 2
      %s31 = sadd.s32 1, %s26
      %p32 = scmp.ge.s32.totalorder %s31, 1
      %s33 = scalar_select %p32, 0, %s31
      %s34 = sadd.s32 1, %s25
      %s35 = scalar_select %p32, %s34, %s25
      %p36 = scmp.ge.s32.totalorder %s35, 7
      %s37 = scalar_select %p36, 0, %s35
      %s38 = ssub.s32 %s25, %s37
      %s39 = ssub.s32 %s26, %s33
      %s40 = sor.u32 %s38, %s39
      %p41 = scmp.eq.s32.totalorder %s40, 0
      %s43 = sadd.s32 %s42, 1
      %s44 = scalar_select %p41, %s42, %s43
      %p47 = pneg %p41
      %p48 = scmp.eq.s32.totalorder %s18, 6
      %p49 = por %p47, %p48
      %p50 = scmp.ne.s32.totalorder %s42, %s45
      %p51 = scmp.eq.s32.totalorder %s18, 0
      %p52 = por %p50, %p51
      %p53 = scmp.ne.s32.totalorder %s42, %s45
      %p54 = scmp.eq.s32.totalorder %s23, 6
      %p55 = por %p53, %p54
      %p56 = scmp.ne.s32.totalorder %s45, %s46
      %p57 = scmp.eq.s32.totalorder %s23, 0
      %p58 = por %p56, %p57
      %p59 = scmp.ne.s32.totalorder %s45, %s46
      %p60 = scmp.eq.s32.totalorder %s24, 6
      %p61 = por %p59, %p60
      %p63 = scmp.ne.s32.totalorder %s46, %s62
      %p64 = scmp.eq.s32.totalorder %s24, 0
      %p65 = por %p63, %p64
      %s66 = ssub.s32 %s25, %s37
      %s67 = ssub.s32 %s26, %s33
      %s68 = sor.u32 %s66, %s67
      %p69 = scmp.eq.s32.totalorder %s68, 0
      %s71 = sadd.s32 %s70, 1
      %s72 = scalar_select %p69, %s70, %s71
      %p75 = pneg %p69
      %p76 = scmp.eq.s32.totalorder %s18, 6
      %p77 = por %p75, %p76
      %p78 = scmp.ne.s32.totalorder %s70, %s73
      %p79 = scmp.eq.s32.totalorder %s18, 0
      %p80 = por %p78, %p79
      %p81 = scmp.ne.s32.totalorder %s70, %s73
      %p82 = scmp.eq.s32.totalorder %s23, 6
      %p83 = por %p81, %p82
      %p84 = scmp.ne.s32.totalorder %s73, %s74
      %p85 = scmp.eq.s32.totalorder %s23, 0
      %p86 = por %p84, %p85
      %p87 = scmp.ne.s32.totalorder %s73, %s74
      %p88 = scmp.eq.s32.totalorder %s24, 6
      %p89 = por %p87, %p88
      %p91 = scmp.ne.s32.totalorder %s74, %s90
      %p92 = scmp.eq.s32.totalorder %s24, 0
      %p93 = por %p91, %p92
      %s94 = ssub.s32 %s25, %s37
      %s95 = ssub.s32 %s26, %s33
      %s96 = sor.u32 %s94, %s95
      %p97 = scmp.eq.s32.totalorder %s96, 0
      %s99 = sadd.s32 %s98, 1
      %s100 = scalar_select %p97, %s98, %s99
      %p103 = pneg %p97
      %p104 = scmp.eq.s32.totalorder %s18, 6
      %p105 = por %p103, %p104
      %p106 = scmp.ne.s32.totalorder %s98, %s101
      %p107 = scmp.eq.s32.totalorder %s18, 0
      %p108 = por %p106, %p107
      %p109 = scmp.ne.s32.totalorder %s98, %s101
      %p110 = scmp.eq.s32.totalorder %s23, 6
      %p111 = por %p109, %p110
      %p112 = scmp.ne.s32.totalorder %s101, %s102
      %p113 = scmp.eq.s32.totalorder %s23, 0
      %p114 = por %p112, %p113
      %p115 = scmp.ne.s32.totalorder %s101, %s102
      %p116 = scmp.eq.s32.totalorder %s24, 6
      %p117 = por %p115, %p116
      %p119 = scmp.ne.s32.totalorder %s102, %s118
      %p120 = scmp.eq.s32.totalorder %s24, 0
      %p121 = por %p119, %p120
      %s122 = ssub.s32 %s25, %s37
      %s123 = ssub.s32 %s26, %s33
      %s124 = sor.u32 %s122, %s123
      %p125 = scmp.eq.s32.totalorder %s124, 0
      %s127 = sadd.s32 %s126, 1
      %s128 = scalar_select %p125, %s126, %s127
      %p131 = pneg %p125
      %p132 = scmp.eq.s32.totalorder %s18, 6
      %p133 = por %p131, %p132
      %p134 = scmp.ne.s32.totalorder %s126, %s129
      %p135 = scmp.eq.s32.totalorder %s18, 0
      %p136 = por %p134, %p135
      %p137 = scmp.ne.s32.totalorder %s126, %s129
      %p138 = scmp.eq.s32.totalorder %s23, 6
      %p139 = por %p137, %p138
      %p140 = scmp.ne.s32.totalorder %s129, %s130
      %p141 = scmp.eq.s32.totalorder %s23, 0
      %p142 = por %p140, %p141
      %p143 = scmp.ne.s32.totalorder %s129, %s130
      %p144 = scmp.eq.s32.totalorder %s24, 6
      %p145 = por %p143, %p144
      %p147 = scmp.ne.s32.totalorder %s130, %s146
      %p148 = scmp.eq.s32.totalorder %s24, 0
      %p149 = por %p147, %p148
      %s150 = ssub.s32 %s25, %s37
      %p151 = scmp.eq.s32.totalorder %s150, 0
      %s153 = sadd.s32 %s152, 1
      %s154 = scalar_select %p151, %s152, %s153
      %p157 = pneg %p151
      %p158 = scmp.eq.s32.totalorder %s18, 6
      %p159 = por %p157, %p158
      %p160 = scmp.ne.s32.totalorder %s152, %s155
      %p161 = scmp.eq.s32.totalorder %s18, 0
      %p162 = por %p160, %p161
      %p163 = scmp.ne.s32.totalorder %s152, %s155
      %p164 = scmp.eq.s32.totalorder %s23, 6
      %p165 = por %p163, %p164
      %p166 = scmp.ne.s32.totalorder %s155, %s156
      %p167 = scmp.eq.s32.totalorder %s23, 0
      %p168 = por %p166, %p167
      %p169 = scmp.ne.s32.totalorder %s155, %s156
      %p170 = scmp.eq.s32.totalorder %s24, 6
      %p171 = por %p169, %p170
      %p173 = scmp.ne.s32.totalorder %s156, %s172
      %p174 = scmp.eq.s32.totalorder %s24, 0
      %p175 = por %p173, %p174
      %s176 = ssub.s32 %s25, %s37
      %p177 = scmp.eq.s32.totalorder %s176, 0
      %s179 = sadd.s32 %s178, 1
      %s180 = scalar_select %p177, %s178, %s179
      %p183 = pneg %p177
      %p184 = scmp.eq.s32.totalorder %s18, 6
      %p185 = por %p183, %p184
      %p186 = scmp.ne.s32.totalorder %s178, %s181
      %p187 = scmp.eq.s32.totalorder %s18, 0
      %p188 = por %p186, %p187
      %p189 = scmp.ne.s32.totalorder %s178, %s181
      %p190 = scmp.eq.s32.totalorder %s23, 6
      %p191 = por %p189, %p190
      %p192 = scmp.ne.s32.totalorder %s181, %s182
      %p193 = scmp.eq.s32.totalorder %s23, 0
      %p194 = por %p192, %p193
      %p195 = scmp.ne.s32.totalorder %s181, %s182
      %p196 = scmp.eq.s32.totalorder %s24, 6
      %p197 = por %p195, %p196
      %p199 = scmp.ne.s32.totalorder %s182, %s198
      %p200 = scmp.eq.s32.totalorder %s24, 0
      %p201 = por %p199, %p200
      %p202 = scmp.le.s32.totalorder 1, %s18
      %p203 = scmp.lt.s32.totalorder %s18, 8
      %p204 = pnand %p202, %p203
      %p205 = pneg %p204
      // Predicated region
      $region9: #{tpu_custom_call.1} parent=5 // pred_check
        _
      $region10: #{tpu_custom_call.1} parent=5 // pred_check_branch
        %207 = sbr.rel (%p204) target = $region12
      $region11: #{tpu_custom_call.1} parent=5 // pred_region
        %s208 = ssub.s32 %s18, 1
      $region12: #{tpu_custom_call.1} parent=5 // pred_fallthru
        _
      %p209 = scmp.lt.s32.totalorder %s18, 7
      // Predicated region
      $region13: #{tpu_custom_call.1} parent=5 // pred_check
        %p210 = pneg %p209
      $region14: #{tpu_custom_call.1} parent=5 // pred_check_branch
        %212 = sbr.rel (%p210) target = $region16
      $region15: #{tpu_custom_call.1} parent=5 // pred_region
        // Predicated region
        $region17: #{tpu_custom_call.1} parent=15 // pred_check
          %p213 = pneg %p52
        $region18: #{tpu_custom_call.1} parent=15 // pred_check_branch
          %215 = sbr.rel (%p213) target = $region20
        $region19: #{tpu_custom_call.1} parent=15 // pred_region
          %s216 = smul.u32 2, %s26
          %p217 = scmp.lt.s32.totalorder %s25, 6
          %s218 = scalar_select %p217, %s25, 6
          %p219 = scmp.lt.s32.totalorder %s216, 1
          %s220 = scalar_select %p219, %s216, 1
          %s221 = smul.addr %s218, 2
          %s222 = sadd.s32 %s220, %s221
          %s223 = smul.addr %s222, 8
          %s224 = scalar_lea.vmem %s0, %s223
          %s225 = smul.u32 2, %s26
        $region20: #{tpu_custom_call.1} parent=15 // pred_fallthru
          _
        // Predicated region
        $region21: #{tpu_custom_call.1} parent=15 // pred_check
          %p226 = pneg %p80
        $region22: #{tpu_custom_call.1} parent=15 // pred_check_branch
          %228 = sbr.rel (%p226) target = $region24
        $region23: #{tpu_custom_call.1} parent=15 // pred_region
          %s229 = smul.u32 2, %s26
          %p230 = scmp.lt.s32.totalorder %s25, 6
          %s231 = scalar_select %p230, %s25, 6
          %p232 = scmp.lt.s32.totalorder %s229, 1
          %s233 = scalar_select %p232, %s229, 1
          %s234 = smul.addr %s231, 2
          %s235 = sadd.s32 %s233, %s234
          %s236 = smul.addr %s235, 8
          %s237 = scalar_lea.vmem %s1, %s236
          %s238 = smul.u32 2, %s26
        $region24: #{tpu_custom_call.1} parent=15 // pred_fallthru
          _
        // Predicated region
        $region25: #{tpu_custom_call.1} parent=15 // pred_check
          %p239 = pneg %p108
        $region26: #{tpu_custom_call.1} parent=15 // pred_check_branch
          %241 = sbr.rel (%p239) target = $region28
        $region27: #{tpu_custom_call.1} parent=15 // pred_region
          %s242 = smul.u32 2, %s26
          %p243 = scmp.lt.s32.totalorder %s25, 6
          %s244 = scalar_select %p243, %s25, 6
          %p245 = scmp.lt.s32.totalorder %s242, 1
          %s246 = scalar_select %p245, %s242, 1
          %s247 = smul.addr %s244, 2
          %s248 = sadd.s32 %s246, %s247
          %s249 = smul.addr %s248, 8
          %s250 = scalar_lea.vmem %s2, %s249
          %s251 = smul.u32 2, %s26
        $region28: #{tpu_custom_call.1} parent=15 // pred_fallthru
          _
        // Predicated region
        $region29: #{tpu_custom_call.1} parent=15 // pred_check
          %p252 = pneg %p136
        $region30: #{tpu_custom_call.1} parent=15 // pred_check_branch
          %254 = sbr.rel (%p252) target = $region32
        $region31: #{tpu_custom_call.1} parent=15 // pred_region
          %s255 = smul.u32 2, %s26
          %p256 = scmp.lt.s32.totalorder %s25, 6
          %s257 = scalar_select %p256, %s25, 6
          %p258 = scmp.lt.s32.totalorder %s255, 1
          %s259 = scalar_select %p258, %s255, 1
          %s260 = smul.addr %s257, 2
          %s261 = sadd.s32 %s259, %s260
          %s262 = smul.addr %s261, 8
          %s263 = scalar_lea.vmem %s3, %s262
          %s264 = smul.u32 2, %s26
        $region32: #{tpu_custom_call.1} parent=15 // pred_fallthru
          _
      $region16: #{tpu_custom_call.1} parent=5 // pred_fallthru
        _
      %p265 = scmp.le.s32.totalorder 1, %s18
      %p266 = scmp.lt.s32.totalorder %s18, 8
      %p267 = pnand %p265, %p266
      %p268 = pneg %p267
      // Predicated region
      $region33: #{tpu_custom_call.1} parent=5 // pred_check
        _
      $region34: #{tpu_custom_call.1} parent=5 // pred_check_branch
        %270 = sbr.rel (%p267) target = $region36
      $region35: #{tpu_custom_call.1} parent=5 // pred_region
        %s271 = ssub.s32 %s18, 1
        %s272 = smul.u32 2, %s28
        %p273 = scmp.lt.s32.totalorder %s27, 6
        %s274 = scalar_select %p273, %s27, 6
        %p275 = scmp.lt.s32.totalorder %s272, 1
        %s276 = scalar_select %p275, %s272, 1
        %s277 = smul.addr %s274, 2
        %s278 = sadd.s32 %s276, %s277
        %s279 = smul.addr %s278, 8
        %s280 = scalar_lea.vmem %s0, %s279
        %p281 = pneg %p58
        %p282 = pneg %p55
        %s283 = smul.u32 2, %s28
        %p284 = scmp.lt.s32.totalorder %s27, 6
        %s285 = scalar_select %p284, %s27, 6
        %p286 = scmp.lt.s32.totalorder %s283, 1
        %s287 = scalar_select %p286, %s283, 1
        %s288 = smul.addr %s285, 2
        %s289 = sadd.s32 %s287, %s288
        %s290 = smul.addr %s289, 8
        %s291 = scalar_lea.vmem %s1, %s290
        %p292 = pneg %p86
        %p293 = pneg %p83
        %s294 = smul.u32 2, %s28
        %p295 = scmp.lt.s32.totalorder %s27, 6
        %s296 = scalar_select %p295, %s27, 6
        %p297 = scmp.lt.s32.totalorder %s294, 1
        %s298 = scalar_select %p297, %s294, 1
        %s299 = smul.addr %s296, 2
        %s300 = sadd.s32 %s298, %s299
        %s301 = smul.addr %s300, 8
        %s302 = scalar_lea.vmem %s2, %s301
        %p303 = pneg %p114
        %p304 = pneg %p111
        %s305 = smul.u32 2, %s28
        %p306 = scmp.lt.s32.totalorder %s27, 6
        %s307 = scalar_select %p306, %s27, 6
        %p308 = scmp.lt.s32.totalorder %s305, 1
        %s309 = scalar_select %p308, %s305, 1
        %s310 = smul.addr %s307, 2
        %s311 = sadd.s32 %s309, %s310
        %s312 = smul.addr %s311, 8
        %s313 = scalar_lea.vmem %s3, %s312
        %p314 = pneg %p142
        %p315 = pneg %p139
        %p316 = pneg %p168
        %p317 = pneg %p165
        %s318 = sand.u32 %s155, 1
        %s319 = scalar_lea.sflag [#allocation5], %s318
        %s320 = sand.u32 %s155, 1
        %s321 = scalar_lea.vmem [#allocation4], %s320
        %p322 = pneg %p194
        %p323 = pneg %p191
        %s324 = sand.u32 %s181, 1
        %s325 = scalar_lea.sflag [#allocation7], %s324
        %s326 = sand.u32 %s181, 1
        %s327 = smul.addr %s326, 8
        %s328 = scalar_lea.vmem [#allocation6], %s327
        %s329 = smul.u32 2, %s28
        %p330 = scmp.lt.s32.totalorder %s27, 6
        %s331 = scalar_select %p330, %s27, 6
        %p332 = scmp.lt.s32.totalorder %s329, 1
        %s333 = scalar_select %p332, %s329, 1
        %s334 = smul.addr %s331, 2
        %s335 = sadd.s32 %s333, %s334
        %s336 = smul.addr %s335, 8
        %s337 = scalar_lea.vmem %s0, %s336
        %s338 = smul.u32 2, %s28
        %s339 = smul.u32 2, %s28
        %p340 = scmp.lt.s32.totalorder %s27, 6
        %s341 = scalar_select %p340, %s27, 6
        %p342 = scmp.lt.s32.totalorder %s339, 1
        %s343 = scalar_select %p342, %s339, 1
        %s344 = smul.addr %s341, 2
        %s345 = sadd.s32 %s343, %s344
        %s346 = smul.addr %s345, 8
        %s347 = scalar_lea.vmem %s1, %s346
        %s348 = smul.u32 2, %s28
        %s349 = smul.u32 2, %s28
        %p350 = scmp.lt.s32.totalorder %s27, 6
        %s351 = scalar_select %p350, %s27, 6
        %p352 = scmp.lt.s32.totalorder %s349, 1
        %s353 = scalar_select %p352, %s349, 1
        %s354 = smul.addr %s351, 2
        %s355 = sadd.s32 %s353, %s354
        %s356 = smul.addr %s355, 8
        %s357 = scalar_lea.vmem %s2, %s356
        %s358 = smul.u32 2, %s28
        %s359 = smul.u32 2, %s28
        %p360 = scmp.lt.s32.totalorder %s27, 6
        %s361 = scalar_select %p360, %s27, 6
        %p362 = scmp.lt.s32.totalorder %s359, 1
        %s363 = scalar_select %p362, %s359, 1
        %s364 = smul.addr %s361, 2
        %s365 = sadd.s32 %s363, %s364
        %s366 = smul.addr %s365, 8
        %s367 = scalar_lea.vmem %s3, %s366
        %s368 = smul.u32 2, %s28
        %p369 = scmp.eq.s32.totalorder %s28, 0
        // Predicated region
        $region37: #{tpu_custom_call.1} parent=35 // pred_check
          %p370 = pneg %p369
        $region38: #{tpu_custom_call.1} parent=35 // pred_check_branch
          %372 = sbr.rel (%p370) target = $region40
        $region39: #{tpu_custom_call.1} parent=35 // pred_region
          %373 = vst [vmem:[#allocation2] sm:$0x1] 0.0
          %374 = vst [vmem:[#allocation3] sm:$0xff] 0.0
        $region40: #{tpu_custom_call.1} parent=35 // pred_fallthru
          _
        %v375 = vld [vmem:[%s337] sm:$0xff]
        %v376 = vld [vmem:[%s337 + $0x8] sm:$0xf]
        %v377 = vld [vmem:[%s347] sm:$0xff]
        %v378 = vld [vmem:[%s347 + $0x8] sm:$0xf]
        %v379 = vsub.f32 %v375, %v377
        %v380 = vsub.f32 %v376, %v378
        %v381 = vmul.f32 %v379, %v379
        %v382 = vmul.f32 %v380, %v380
        %v383 = vld [vmem:[#allocation2] sm:$0x1]
        %vm384 = vcmask 1043456
        %v385 = vsel %vm384, %v382, 0.0
        %v386 = vadd.f32 %v381, %v385
        %v387 = vrot.slane %v386, 4
        %v388 = vadd.f32 %v386, %v387
        %v389 = vrot.slane %v388, 2
        %v390 = vadd.f32 %v388, %v389
        %v391 = vrot.slane %v390, 1
        %v392 = vadd.f32 %v390, %v391
        %v393 = vadd.f32 %v383, %v392
        %394 = vst [vmem:[#allocation2] sm:$0x1] %v393
        %v395 = vld [vmem:[%s357] sm:$0xff]
        %v396 = vld [vmem:[%s357 + $0x8] sm:$0xff]
        %v397 = vld [vmem:[%s367] sm:$0xff]
        %v398 = vld [vmem:[%s367 + $0x8] sm:$0xff]
        %v399 = vadd.f32 %v397, 1.0
        %v400 = vadd.f32 %v398, 1.0
        %v401 = vmul.f32 %v395, %v395
        %v402 = vmul.f32 %v396, %v396
        %v403 = vsub.f32 %v399, %v401
        %v404 = vsub.f32 %v400, %v402
        %v405 = vmul.f32 %v397, 1.442695
        %v406 = vpow.pop %v405
        %v407 = vmul.f32 %v398, 1.442695
        %v408 = vpow.pop %v407
        %v409 = vsub.f32 %v403, %v406
        %v410 = vsub.f32 %v404, %v408
        %v411 = vld [vmem:[#allocation3] sm:$0xff]
        %v412 = vadd.f32 %v409, %v410
        %v413 = vadd.f32 %v411, %v412
        %414 = vst [vmem:[#allocation3] sm:$0xff] %v413
        // Predicated region
        $region41: #{tpu_custom_call.1} parent=35 // pred_check
          %p415 = pneg %p369
        $region42: #{tpu_custom_call.1} parent=35 // pred_check_branch
          %417 = sbr.rel (%p415) target = $region44
        $region43: #{tpu_custom_call.1} parent=35 // pred_region
          %v418 = vld [vmem:[#allocation2] sm:$0x1]
          %419 = vst [vmem:[%s321] sm:$0x1] %v418
          %v420 = vld [vmem:[#allocation3] sm:$0xff]
          %421 = vst [vmem:[%s328] sm:$0xff] %v420
        $region44: #{tpu_custom_call.1} parent=35 // pred_fallthru
          _
        %s422 = sand.u32 %s155, 1
        %s423 = scalar_lea.sflag [#allocation5], %s422
        %s424 = sand.u32 %s155, 1
        %s425 = scalar_lea.vmem [#allocation4], %s424
        %s426 = sand.u32 %s181, 1
        %s427 = scalar_lea.sflag [#allocation7], %s426
        %s428 = sand.u32 %s181, 1
        %s429 = smul.addr %s428, 8
        %s430 = scalar_lea.vmem [#allocation6], %s429
        // Predicated region
        $region45: #{tpu_custom_call.1} parent=35 // pred_check
          %p431 = pneg %p165
        $region46: #{tpu_custom_call.1} parent=35 // pred_check_branch
          %433 = sbr.rel (%p431) target = $region48
        $region47: #{tpu_custom_call.1} parent=35 // pred_region
          %435 = vsyncadd %s423, 0
          %s436 = scalar_lea.hbm %s4, %s27
          %s438 = sshll.u32 %s425, 4
          %s439 = int_to_ptr.vmem [resolvable:$true] %s438
          %s440 = sshll.u32 %s436, 4
          %s441 = int_to_ptr.hbm [resolvable:$true] %s440
          %443 = dma.vmem_to_hbm [thread:$0]  %s439, 16, %s441, %s423
        $region48: #{tpu_custom_call.1} parent=35 // pred_fallthru
          _
        // Predicated region
        $region49: #{tpu_custom_call.1} parent=35 // pred_check
          %p444 = pneg %p191
        $region50: #{tpu_custom_call.1} parent=35 // pred_check_branch
          %446 = sbr.rel (%p444) target = $region52
        $region51: #{tpu_custom_call.1} parent=35 // pred_region
          %448 = vsyncadd %s427, 0
          %s449 = smul.addr %s27, 8
          %s450 = scalar_lea.hbm %s5, %s449
          %s452 = sshll.u32 %s430, 4
          %s453 = int_to_ptr.vmem [resolvable:$true] %s452
          %s454 = sshll.u32 %s450, 4
          %s455 = int_to_ptr.hbm [resolvable:$true] %s454
          %457 = dma.vmem_to_hbm [thread:$0]  %s453, 128, %s455, %s427
        $region52: #{tpu_custom_call.1} parent=35 // pred_fallthru
          _
      $region36: #{tpu_custom_call.1} parent=5 // pred_fallthru
        _
      %p458 = scmp.le.s32.totalorder 2, %s18
      // Predicated region
      $region53: #{tpu_custom_call.1} parent=5 // pred_check
        %p459 = pneg %p458
      $region54: #{tpu_custom_call.1} parent=5 // pred_check_branch
        %461 = sbr.rel (%p459) target = $region56
      $region55: #{tpu_custom_call.1} parent=5 // pred_region
        %s462 = ssub.s32 %s18, 2
        // Predicated region
        $region57: #{tpu_custom_call.1} parent=55 // pred_check
          %p463 = pneg %p171
        $region58: #{tpu_custom_call.1} parent=55 // pred_check_branch
          %465 = sbr.rel (%p463) target = $region60
        $region59: #{tpu_custom_call.1} parent=55 // pred_region
          %s466 = sand.u32 %s156, 1
          %s467 = scalar_lea.sflag [#allocation5], %s466
          %s468 = sand.u32 %s156, 1
          %s469 = scalar_lea.vmem [#allocation4], %s468
          %471 = dma.done %s467, 16
        $region60: #{tpu_custom_call.1} parent=55 // pred_fallthru
          _
        // Predicated region
        $region61: #{tpu_custom_call.1} parent=55 // pred_check
          %p472 = pneg %p197
        $region62: #{tpu_custom_call.1} parent=55 // pred_check_branch
          %474 = sbr.rel (%p472) target = $region64
        $region63: #{tpu_custom_call.1} parent=55 // pred_region
          %s475 = sand.u32 %s182, 1
          %s476 = scalar_lea.sflag [#allocation7], %s475
          %s477 = sand.u32 %s182, 1
          %s478 = smul.addr %s477, 8
          %s479 = scalar_lea.vmem [#allocation6], %s478
          %481 = dma.done %s476, 128
        $region64: #{tpu_custom_call.1} parent=55 // pred_fallthru
          _
      $region56: #{tpu_custom_call.1} parent=5 // pred_fallthru
        _
    $region6: #{tpu_custom_call.1} parent=1 // loop_footer
      %s22 = sadd.s32 1, %s18
    $region7: #{tpu_custom_call.1} parent=1 // loop_footer_branch
      %17 = sbr.rel target = $region3
    $region8: #{tpu_custom_call.1} parent=1 // loop_exit
      _
    %482 = vsyncpa [#allocation5], 1
    %s483 = scalar_lea.sflag [#allocation5], 1
    %484 = vsyncpa %s483, 1
    %485 = vsyncpa [#allocation7], 1
    %s486 = scalar_lea.sflag [#allocation7], 1
    %487 = vsyncpa %s486, 1

</llo_original>
